<compile_context>
chip_gen: v5e
topology: v5e:2x2
jax: 0.10.0
libtpu: 0.0.40
codegen_flags: <defaults>
</compile_context>

<pallas_src>
import jax
import jax.numpy as jnp
from jax import lax
from jax.experimental import pallas as pl
from jax.experimental.pallas import tpu as pltpu


def _gather_scale_kernel(qidx_ref,      # SMEM prefetch: (B, K) int32 query ids
                         boxes_ref,     # (Q, 4)   raw cxcywh boxes
                         coords_ref,    # (Q, 2P)  raw contour coords (x,y interleaved)
                         cscale_ref,    # (1, 2P)  [W, H, W, H, ...]
                         gboxes_ref,    # (K, 4)   out: gathered xyxy boxes * [W,H,W,H]
                         gcoords_ref,   # (K, 2P)  out: gathered coords * [W,H,...]
                         xyxy_ref):     # VMEM scratch (Q, 4): converted + scaled boxes
    b = pl.program_id(0)

    # Hoisted per-image scale row (built once in the wrapper, loaded once here).
    cscale = cscale_ref[...]            # (1, 2P) -- starts with [W, H]
    wh = cscale[:, 0:2]                 # (1, 2) static slice -> [W, H] (no extra input)

    # cxcywh -> xyxy + scale for ALL Q boxes at once (bulk VPU, done once per
    # image, static lane-slice stores into the VMEM scratch -- no per-row work).
    box = boxes_ref[...]                # (Q, 4) = [cx, cy, w, h]
    cxy = box[:, 0:2]
    half = 0.5 * box[:, 2:4]
    xyxy_ref[:, 0:2] = (cxy - half) * wh
    xyxy_ref[:, 2:4] = (cxy + half) * wh

    # Fully unrolled gather over the K (static) selected queries: static output
    # row offsets, independent load/store chains visible to the scheduler.
    num_k = gboxes_ref.shape[0]
    for k in range(num_k):
        qi = qidx_ref[b, k]                                        # SMEM scalar read
        gcoords_ref[pl.ds(k, 1), :] = coords_ref[pl.ds(qi, 1), :] * cscale
        gboxes_ref[pl.ds(k, 1), :] = xyxy_ref[pl.ds(qi, 1), :]


def contour_postprocess(logits, boxes, coords, orig_target_sizes,
                        num_classes, num_top_queries):
    B, Q, C = logits.shape
    P = coords.shape[2]
    assert C == num_classes
    K = num_top_queries
    P2 = 2 * P

    sizes = orig_target_sizes.astype(jnp.float32)              # (B, 2) = (W, H)

    # top-k over flattened (query, class).  Run on raw logits (sigmoid is
    # monotonic) so the full sigmoid scores tensor is never materialized.
    # TODO(synk): no clean Pallas top-k primitive on TPU; lax.top_k stays in XLA.
    flat_logits = logits.reshape(B, Q * C)
    top_logits, top_index = lax.top_k(flat_logits, K)
    scores = jax.nn.sigmoid(top_logits)                         # stays in XLA (fuses)
    labels = (top_index % num_classes).astype(jnp.int32)
    qidx = (top_index // num_classes).astype(jnp.int32)

    # Lane-dense views + precomputed per-image scale row (W/H interleave).
    coords_flat = coords.reshape(B, Q, P2)
    cscale = jnp.tile(sizes, (1, P)).reshape(B, 1, P2)          # [W, H, W, H, ...]

    bytes_accessed = 4 * (B * K                                 # qidx (prefetch)
                          + B * Q * 4 + B * Q * P2 + B * P2     # inputs
                          + B * K * 4 + B * K * P2)             # outputs
    cost = pl.CostEstimate(flops=B * (8 * Q + K * (P2 + 2)),
                           transcendentals=0,
                           bytes_accessed=bytes_accessed)

    gboxes, gcoords = pl.pallas_call(
        _gather_scale_kernel,
        out_shape=(jax.ShapeDtypeStruct((B, K, 4), jnp.float32),
                   jax.ShapeDtypeStruct((B, K, P2), jnp.float32)),
        grid_spec=pltpu.PrefetchScalarGridSpec(
            num_scalar_prefetch=1,
            grid=(B,),
            in_specs=[
                pl.BlockSpec((None, Q, 4), lambda b, idx: (b, 0, 0)),
                pl.BlockSpec((None, Q, P2), lambda b, idx: (b, 0, 0)),
                pl.BlockSpec((None, 1, P2), lambda b, idx: (b, 0, 0)),
            ],
            out_specs=[
                pl.BlockSpec((None, K, 4), lambda b, idx: (b, 0, 0)),
                pl.BlockSpec((None, K, P2), lambda b, idx: (b, 0, 0)),
            ],
            scratch_shapes=[pltpu.VMEM((Q, 4), jnp.float32)]),
        compiler_params=pltpu.CompilerParams(
            dimension_semantics=("parallel",)),
        cost_estimate=cost,
    )(qidx, boxes, coords_flat, cscale)

    gcoords = gcoords.reshape(B, K, P, 2)
    labels = labels + 1  # contiguous_id_to_json_category_id is None
    # TODO(synk): pycocotools frPyObjects/merge/decode mask rasterization has no
    # Pallas/TPU equivalent; we return the deploy-mode tuple instead.
    return labels, gboxes, gcoords, scores


if __name__ == "__main__":
    B, Q, C, P, K = 2, 32, 20, 16, 8
    key = jax.random.PRNGKey(0)
    k1, k2, k3 = jax.random.split(key, 3)
    logits = jax.random.normal(k1, (B, Q, C), dtype=jnp.float32)
    boxes = jax.random.uniform(k2, (B, Q, 4), jnp.float32, 0.1, 0.9)
    coords = jax.random.uniform(k3, (B, Q, P, 2), jnp.float32)
    orig_sizes = jnp.array([[640.0, 480.0], [512.0, 384.0]], dtype=jnp.float32)

    labels, gboxes, gcoords, scores = jax.block_until_ready(
        contour_postprocess(logits, boxes, coords, orig_sizes,
                            num_classes=C, num_top_queries=K))

    # Pure-JAX reference for a sanity check (mirrors the PyTorch path).
    cxcy, wh = boxes[..., :2], boxes[..., 2:]
    ref_boxes = jnp.concatenate([cxcy - 0.5 * wh, cxcy + 0.5 * wh], axis=-1)
    ref_boxes = ref_boxes * jnp.tile(orig_sizes, (1, 2))[:, None, :]
    ref_coords = coords * orig_sizes[:, None, None, :]
    ref_scores = jax.nn.sigmoid(logits).reshape(B, Q * C)
    ref_top, ref_idx = jax.lax.top_k(ref_scores, K)
    ref_q = ref_idx // C
    ref_lab = ref_idx % C + 1
    rb = jnp.take_along_axis(ref_boxes, ref_q[..., None], axis=1)
    rc = jnp.take_along_axis(ref_coords, ref_q[..., None, None], axis=1)

    assert labels.shape == (B, K) and scores.shape == (B, K)
    assert gboxes.shape == (B, K, 4) and gcoords.shape == (B, K, P, 2)
    assert bool(jnp.all(labels == ref_lab))
    assert bool(jnp.allclose(scores, ref_top, atol=1e-5))
    assert bool(jnp.allclose(gboxes, rb, rtol=1e-5, atol=1e-2))
    assert bool(jnp.allclose(gcoords, rc, rtol=1e-5, atol=1e-2))
    print("KERNEL_OK")
</pallas_src>

<mosaic_0001>
module attributes {stable_mosaic.version = 11 : i64} {
  func.func @_gather_scale_kernel(%arg0: i32, %arg1: memref<2x8xi32, #tpu.memory_space<smem>>, %arg2: memref<1x32x4xf32, #tpu.memory_space<vmem>>, %arg3: memref<1x32x32xf32, #tpu.memory_space<vmem>>, %arg4: memref<1x1x32xf32, #tpu.memory_space<vmem>>, %arg5: memref<1x8x4xf32, #tpu.memory_space<vmem>>, %arg6: memref<1x8x32xf32, #tpu.memory_space<vmem>>, %arg7: memref<32x4xf32, #tpu.memory_space<vmem>>) attributes {dimension_semantics = [#tpu.dimension_semantics<parallel>], iteration_bounds = array<i64: 2>, scalar_prefetch = 1 : i64, scratch_operands = 1 : i64, tpu.core_type = #tpu.core_type<tc>, window_params = [{transform_indices = @transform_0, window_bounds = array<i64: 1, 32, 4>}, {transform_indices = @transform_1, window_bounds = array<i64: 1, 32, 32>}, {transform_indices = @transform_2, window_bounds = array<i64: 1, 1, 32>}, {transform_indices = @transform_3, window_bounds = array<i64: 1, 8, 4>}, {transform_indices = @transform_4, window_bounds = array<i64: 1, 8, 32>}]} {
    %c0 = arith.constant 0 : index
    %c0_0 = arith.constant 0 : index
    %c0_1 = arith.constant 0 : index
    %0 = vector.load %arg4[%c0, %c0_0, %c0_1] : memref<1x1x32xf32, #tpu.memory_space<vmem>>, vector<1x1x32xf32>
    %1 = vector.shape_cast %0 : vector<1x1x32xf32> to vector<1x32xf32>
    %2 = vector.extract_strided_slice %1 {offsets = [0, 0], sizes = [1, 2], strides = [1, 1]} : vector<1x32xf32> to vector<1x2xf32>
    %c0_2 = arith.constant 0 : index
    %c0_3 = arith.constant 0 : index
    %c0_4 = arith.constant 0 : index
    %3 = vector.load %arg2[%c0_2, %c0_3, %c0_4] : memref<1x32x4xf32, #tpu.memory_space<vmem>>, vector<1x32x4xf32>
    %4 = vector.shape_cast %3 : vector<1x32x4xf32> to vector<32x4xf32>
    %5 = vector.extract_strided_slice %4 {offsets = [0, 0], sizes = [32, 2], strides = [1, 1]} : vector<32x4xf32> to vector<32x2xf32>
    %6 = vector.extract_strided_slice %4 {offsets = [0, 2], sizes = [32, 2], strides = [1, 1]} : vector<32x4xf32> to vector<32x2xf32>
    %cst = arith.constant 5.000000e-01 : f32
    %7 = vector.broadcast %cst : f32 to vector<32x2xf32>
    %8 = arith.mulf %7, %6 : vector<32x2xf32>
    %9 = arith.subf %5, %8 : vector<32x2xf32>
    %10 = vector.broadcast %2 : vector<1x2xf32> to vector<32x2xf32>
    %11 = arith.mulf %9, %10 : vector<32x2xf32>
    %c0_5 = arith.constant 0 : index
    %c0_6 = arith.constant 0 : index
    %12 = vector.load %arg7[%c0_5, %c0_6] : memref<32x4xf32, #tpu.memory_space<vmem>>, vector<32x2xf32>
    tpu.vector_store %arg7[%c0_5, %c0_6], %11 {strides = array<i32>} : memref<32x4xf32, #tpu.memory_space<vmem>>, vector<32x2xf32>,
    %13 = arith.addf %5, %8 : vector<32x2xf32>
    %14 = vector.broadcast %2 : vector<1x2xf32> to vector<32x2xf32>
    %15 = arith.mulf %13, %14 : vector<32x2xf32>
    %c0_7 = arith.constant 0 : index
    %c2 = arith.constant 2 : index
    %16 = vector.load %arg7[%c0_7, %c2] : memref<32x4xf32, #tpu.memory_space<vmem>>, vector<32x2xf32>
    tpu.vector_store %arg7[%c0_7, %c2], %15 {strides = array<i32>} : memref<32x4xf32, #tpu.memory_space<vmem>>, vector<32x2xf32>,
    %17 = arith.index_cast %arg0 : i32 to index
    %c0_8 = arith.constant 0 : index
    %18 = memref.load %arg1[%17, %c0_8] : memref<2x8xi32, #tpu.memory_space<smem>>
    %c0_9 = arith.constant 0 : index
    %19 = arith.index_cast %18 : i32 to index
    %c0_10 = arith.constant 0 : index
    %20 = vector.load %arg3[%c0_9, %19, %c0_10] : memref<1x32x32xf32, #tpu.memory_space<vmem>>, vector<1x1x32xf32>
    %21 = vector.shape_cast %20 : vector<1x1x32xf32> to vector<1x32xf32>
    %22 = arith.mulf %21, %1 : vector<1x32xf32>
    %c0_11 = arith.constant 0 : index
    %c0_12 = arith.constant 0 : index
    %c0_13 = arith.constant 0 : index
    %23 = vector.load %arg6[%c0_11, %c0_12, %c0_13] : memref<1x8x32xf32, #tpu.memory_space<vmem>>, vector<1x1x32xf32>
    %24 = vector.shape_cast %23 : vector<1x1x32xf32> to vector<1x32xf32>
    %25 = vector.shape_cast %22 : vector<1x32xf32> to vector<1x1x32xf32>
    tpu.vector_store %arg6[%c0_11, %c0_12, %c0_13], %25 {strides = array<i32>} : memref<1x8x32xf32, #tpu.memory_space<vmem>>, vector<1x1x32xf32>,
    %26 = arith.index_cast %18 : i32 to index
    %c0_14 = arith.constant 0 : index
    %27 = vector.load %arg7[%26, %c0_14] : memref<32x4xf32, #tpu.memory_space<vmem>>, vector<1x4xf32>
    %c0_15 = arith.constant 0 : index
    %c0_16 = arith.constant 0 : index
    %c0_17 = arith.constant 0 : index
    %28 = vector.load %arg5[%c0_15, %c0_16, %c0_17] : memref<1x8x4xf32, #tpu.memory_space<vmem>>, vector<1x1x4xf32>
    %29 = vector.shape_cast %28 : vector<1x1x4xf32> to vector<1x4xf32>
    %30 = vector.shape_cast %27 : vector<1x4xf32> to vector<1x1x4xf32>
    tpu.vector_store %arg5[%c0_15, %c0_16, %c0_17], %30 {strides = array<i32>} : memref<1x8x4xf32, #tpu.memory_space<vmem>>, vector<1x1x4xf32>,
    %31 = arith.index_cast %arg0 : i32 to index
    %c1 = arith.constant 1 : index
    %32 = memref.load %arg1[%31, %c1] : memref<2x8xi32, #tpu.memory_space<smem>>
    %c0_18 = arith.constant 0 : index
    %33 = arith.index_cast %32 : i32 to index
    %c0_19 = arith.constant 0 : index
    %34 = vector.load %arg3[%c0_18, %33, %c0_19] : memref<1x32x32xf32, #tpu.memory_space<vmem>>, vector<1x1x32xf32>
    %35 = vector.shape_cast %34 : vector<1x1x32xf32> to vector<1x32xf32>
    %36 = arith.mulf %35, %1 : vector<1x32xf32>
    %c0_20 = arith.constant 0 : index
    %c1_21 = arith.constant 1 : index
    %c0_22 = arith.constant 0 : index
    %37 = vector.load %arg6[%c0_20, %c1_21, %c0_22] : memref<1x8x32xf32, #tpu.memory_space<vmem>>, vector<1x1x32xf32>
    %38 = vector.shape_cast %37 : vector<1x1x32xf32> to vector<1x32xf32>
    %39 = vector.shape_cast %36 : vector<1x32xf32> to vector<1x1x32xf32>
    tpu.vector_store %arg6[%c0_20, %c1_21, %c0_22], %39 {strides = array<i32>} : memref<1x8x32xf32, #tpu.memory_space<vmem>>, vector<1x1x32xf32>,
    %40 = arith.index_cast %32 : i32 to index
    %c0_23 = arith.constant 0 : index
    %41 = vector.load %arg7[%40, %c0_23] : memref<32x4xf32, #tpu.memory_space<vmem>>, vector<1x4xf32>
    %c0_24 = arith.constant 0 : index
    %c1_25 = arith.constant 1 : index
    %c0_26 = arith.constant 0 : index
    %42 = vector.load %arg5[%c0_24, %c1_25, %c0_26] : memref<1x8x4xf32, #tpu.memory_space<vmem>>, vector<1x1x4xf32>
    %43 = vector.shape_cast %42 : vector<1x1x4xf32> to vector<1x4xf32>
    %44 = vector.shape_cast %41 : vector<1x4xf32> to vector<1x1x4xf32>
    tpu.vector_store %arg5[%c0_24, %c1_25, %c0_26], %44 {strides = array<i32>} : memref<1x8x4xf32, #tpu.memory_space<vmem>>, vector<1x1x4xf32>,
    %45 = arith.index_cast %arg0 : i32 to index
    %c2_27 = arith.constant 2 : index
    %46 = memref.load %arg1[%45, %c2_27] : memref<2x8xi32, #tpu.memory_space<smem>>
    %c0_28 = arith.constant 0 : index
    %47 = arith.index_cast %46 : i32 to index
    %c0_29 = arith.constant 0 : index
    %48 = vector.load %arg3[%c0_28, %47, %c0_29] : memref<1x32x32xf32, #tpu.memory_space<vmem>>, vector<1x1x32xf32>
    %49 = vector.shape_cast %48 : vector<1x1x32xf32> to vector<1x32xf32>
    %50 = arith.mulf %49, %1 : vector<1x32xf32>
    %c0_30 = arith.constant 0 : index
    %c2_31 = arith.constant 2 : index
    %c0_32 = arith.constant 0 : index
    %51 = vector.load %arg6[%c0_30, %c2_31, %c0_32] : memref<1x8x32xf32, #tpu.memory_space<vmem>>, vector<1x1x32xf32>
    %52 = vector.shape_cast %51 : vector<1x1x32xf32> to vector<1x32xf32>
    %53 = vector.shape_cast %50 : vector<1x32xf32> to vector<1x1x32xf32>
    tpu.vector_store %arg6[%c0_30, %c2_31, %c0_32], %53 {strides = array<i32>} : memref<1x8x32xf32, #tpu.memory_space<vmem>>, vector<1x1x32xf32>,
    %54 = arith.index_cast %46 : i32 to index
    %c0_33 = arith.constant 0 : index
    %55 = vector.load %arg7[%54, %c0_33] : memref<32x4xf32, #tpu.memory_space<vmem>>, vector<1x4xf32>
    %c0_34 = arith.constant 0 : index
    %c2_35 = arith.constant 2 : index
    %c0_36 = arith.constant 0 : index
    %56 = vector.load %arg5[%c0_34, %c2_35, %c0_36] : memref<1x8x4xf32, #tpu.memory_space<vmem>>, vector<1x1x4xf32>
    %57 = vector.shape_cast %56 : vector<1x1x4xf32> to vector<1x4xf32>
    %58 = vector.shape_cast %55 : vector<1x4xf32> to vector<1x1x4xf32>
    tpu.vector_store %arg5[%c0_34, %c2_35, %c0_36], %58 {strides = array<i32>} : memref<1x8x4xf32, #tpu.memory_space<vmem>>, vector<1x1x4xf32>,
    %59 = arith.index_cast %arg0 : i32 to index
    %c3 = arith.constant 3 : index
    %60 = memref.load %arg1[%59, %c3] : memref<2x8xi32, #tpu.memory_space<smem>>
    %c0_37 = arith.constant 0 : index
    %61 = arith.index_cast %60 : i32 to index
    %c0_38 = arith.constant 0 : index
    %62 = vector.load %arg3[%c0_37, %61, %c0_38] : memref<1x32x32xf32, #tpu.memory_space<vmem>>, vector<1x1x32xf32>
    %63 = vector.shape_cast %62 : vector<1x1x32xf32> to vector<1x32xf32>
    %64 = arith.mulf %63, %1 : vector<1x32xf32>
    %c0_39 = arith.constant 0 : index
    %c3_40 = arith.constant 3 : index
    %c0_41 = arith.constant 0 : index
    %65 = vector.load %arg6[%c0_39, %c3_40, %c0_41] : memref<1x8x32xf32, #tpu.memory_space<vmem>>, vector<1x1x32xf32>
    %66 = vector.shape_cast %65 : vector<1x1x32xf32> to vector<1x32xf32>
    %67 = vector.shape_cast %64 : vector<1x32xf32> to vector<1x1x32xf32>
    tpu.vector_store %arg6[%c0_39, %c3_40, %c0_41], %67 {strides = array<i32>} : memref<1x8x32xf32, #tpu.memory_space<vmem>>, vector<1x1x32xf32>,
    %68 = arith.index_cast %60 : i32 to index
    %c0_42 = arith.constant 0 : index
    %69 = vector.load %arg7[%68, %c0_42] : memref<32x4xf32, #tpu.memory_space<vmem>>, vector<1x4xf32>
    %c0_43 = arith.constant 0 : index
    %c3_44 = arith.constant 3 : index
    %c0_45 = arith.constant 0 : index
    %70 = vector.load %arg5[%c0_43, %c3_44, %c0_45] : memref<1x8x4xf32, #tpu.memory_space<vmem>>, vector<1x1x4xf32>
    %71 = vector.shape_cast %70 : vector<1x1x4xf32> to vector<1x4xf32>
    %72 = vector.shape_cast %69 : vector<1x4xf32> to vector<1x1x4xf32>
    tpu.vector_store %arg5[%c0_43, %c3_44, %c0_45], %72 {strides = array<i32>} : memref<1x8x4xf32, #tpu.memory_space<vmem>>, vector<1x1x4xf32>,
    %73 = arith.index_cast %arg0 : i32 to index
    %c4 = arith.constant 4 : index
    %74 = memref.load %arg1[%73, %c4] : memref<2x8xi32, #tpu.memory_space<smem>>
    %c0_46 = arith.constant 0 : index
    %75 = arith.index_cast %74 : i32 to index
    %c0_47 = arith.constant 0 : index
    %76 = vector.load %arg3[%c0_46, %75, %c0_47] : memref<1x32x32xf32, #tpu.memory_space<vmem>>, vector<1x1x32xf32>
    %77 = vector.shape_cast %76 : vector<1x1x32xf32> to vector<1x32xf32>
    %78 = arith.mulf %77, %1 : vector<1x32xf32>
    %c0_48 = arith.constant 0 : index
    %c4_49 = arith.constant 4 : index
    %c0_50 = arith.constant 0 : index
    %79 = vector.load %arg6[%c0_48, %c4_49, %c0_50] : memref<1x8x32xf32, #tpu.memory_space<vmem>>, vector<1x1x32xf32>
    %80 = vector.shape_cast %79 : vector<1x1x32xf32> to vector<1x32xf32>
    %81 = vector.shape_cast %78 : vector<1x32xf32> to vector<1x1x32xf32>
    tpu.vector_store %arg6[%c0_48, %c4_49, %c0_50], %81 {strides = array<i32>} : memref<1x8x32xf32, #tpu.memory_space<vmem>>, vector<1x1x32xf32>,
    %82 = arith.index_cast %74 : i32 to index
    %c0_51 = arith.constant 0 : index
    %83 = vector.load %arg7[%82, %c0_51] : memref<32x4xf32, #tpu.memory_space<vmem>>, vector<1x4xf32>
    %c0_52 = arith.constant 0 : index
    %c4_53 = arith.constant 4 : index
    %c0_54 = arith.constant 0 : index
    %84 = vector.load %arg5[%c0_52, %c4_53, %c0_54] : memref<1x8x4xf32, #tpu.memory_space<vmem>>, vector<1x1x4xf32>
    %85 = vector.shape_cast %84 : vector<1x1x4xf32> to vector<1x4xf32>
    %86 = vector.shape_cast %83 : vector<1x4xf32> to vector<1x1x4xf32>
    tpu.vector_store %arg5[%c0_52, %c4_53, %c0_54], %86 {strides = array<i32>} : memref<1x8x4xf32, #tpu.memory_space<vmem>>, vector<1x1x4xf32>,
    %87 = arith.index_cast %arg0 : i32 to index
    %c5 = arith.constant 5 : index
    %88 = memref.load %arg1[%87, %c5] : memref<2x8xi32, #tpu.memory_space<smem>>
    %c0_55 = arith.constant 0 : index
    %89 = arith.index_cast %88 : i32 to index
    %c0_56 = arith.constant 0 : index
    %90 = vector.load %arg3[%c0_55, %89, %c0_56] : memref<1x32x32xf32, #tpu.memory_space<vmem>>, vector<1x1x32xf32>
    %91 = vector.shape_cast %90 : vector<1x1x32xf32> to vector<1x32xf32>
    %92 = arith.mulf %91, %1 : vector<1x32xf32>
    %c0_57 = arith.constant 0 : index
    %c5_58 = arith.constant 5 : index
    %c0_59 = arith.constant 0 : index
    %93 = vector.load %arg6[%c0_57, %c5_58, %c0_59] : memref<1x8x32xf32, #tpu.memory_space<vmem>>, vector<1x1x32xf32>
    %94 = vector.shape_cast %93 : vector<1x1x32xf32> to vector<1x32xf32>
    %95 = vector.shape_cast %92 : vector<1x32xf32> to vector<1x1x32xf32>
    tpu.vector_store %arg6[%c0_57, %c5_58, %c0_59], %95 {strides = array<i32>} : memref<1x8x32xf32, #tpu.memory_space<vmem>>, vector<1x1x32xf32>,
    %96 = arith.index_cast %88 : i32 to index
    %c0_60 = arith.constant 0 : index
    %97 = vector.load %arg7[%96, %c0_60] : memref<32x4xf32, #tpu.memory_space<vmem>>, vector<1x4xf32>
    %c0_61 = arith.constant 0 : index
    %c5_62 = arith.constant 5 : index
    %c0_63 = arith.constant 0 : index
    %98 = vector.load %arg5[%c0_61, %c5_62, %c0_63] : memref<1x8x4xf32, #tpu.memory_space<vmem>>, vector<1x1x4xf32>
    %99 = vector.shape_cast %98 : vector<1x1x4xf32> to vector<1x4xf32>
    %100 = vector.shape_cast %97 : vector<1x4xf32> to vector<1x1x4xf32>
    tpu.vector_store %arg5[%c0_61, %c5_62, %c0_63], %100 {strides = array<i32>} : memref<1x8x4xf32, #tpu.memory_space<vmem>>, vector<1x1x4xf32>,
    %101 = arith.index_cast %arg0 : i32 to index
    %c6 = arith.constant 6 : index
    %102 = memref.load %arg1[%101, %c6] : memref<2x8xi32, #tpu.memory_space<smem>>
    %c0_64 = arith.constant 0 : index
    %103 = arith.index_cast %102 : i32 to index
    %c0_65 = arith.constant 0 : index
    %104 = vector.load %arg3[%c0_64, %103, %c0_65] : memref<1x32x32xf32, #tpu.memory_space<vmem>>, vector<1x1x32xf32>
    %105 = vector.shape_cast %104 : vector<1x1x32xf32> to vector<1x32xf32>
    %106 = arith.mulf %105, %1 : vector<1x32xf32>
    %c0_66 = arith.constant 0 : index
    %c6_67 = arith.constant 6 : index
    %c0_68 = arith.constant 0 : index
    %107 = vector.load %arg6[%c0_66, %c6_67, %c0_68] : memref<1x8x32xf32, #tpu.memory_space<vmem>>, vector<1x1x32xf32>
    %108 = vector.shape_cast %107 : vector<1x1x32xf32> to vector<1x32xf32>
    %109 = vector.shape_cast %106 : vector<1x32xf32> to vector<1x1x32xf32>
    tpu.vector_store %arg6[%c0_66, %c6_67, %c0_68], %109 {strides = array<i32>} : memref<1x8x32xf32, #tpu.memory_space<vmem>>, vector<1x1x32xf32>,
    %110 = arith.index_cast %102 : i32 to index
    %c0_69 = arith.constant 0 : index
    %111 = vector.load %arg7[%110, %c0_69] : memref<32x4xf32, #tpu.memory_space<vmem>>, vector<1x4xf32>
    %c0_70 = arith.constant 0 : index
    %c6_71 = arith.constant 6 : index
    %c0_72 = arith.constant 0 : index
    %112 = vector.load %arg5[%c0_70, %c6_71, %c0_72] : memref<1x8x4xf32, #tpu.memory_space<vmem>>, vector<1x1x4xf32>
    %113 = vector.shape_cast %112 : vector<1x1x4xf32> to vector<1x4xf32>
    %114 = vector.shape_cast %111 : vector<1x4xf32> to vector<1x1x4xf32>
    tpu.vector_store %arg5[%c0_70, %c6_71, %c0_72], %114 {strides = array<i32>} : memref<1x8x4xf32, #tpu.memory_space<vmem>>, vector<1x1x4xf32>,
    %115 = arith.index_cast %arg0 : i32 to index
    %c7 = arith.constant 7 : index
    %116 = memref.load %arg1[%115, %c7] : memref<2x8xi32, #tpu.memory_space<smem>>
    %c0_73 = arith.constant 0 : index
    %117 = arith.index_cast %116 : i32 to index
    %c0_74 = arith.constant 0 : index
    %118 = vector.load %arg3[%c0_73, %117, %c0_74] : memref<1x32x32xf32, #tpu.memory_space<vmem>>, vector<1x1x32xf32>
    %119 = vector.shape_cast %118 : vector<1x1x32xf32> to vector<1x32xf32>
    %120 = arith.mulf %119, %1 : vector<1x32xf32>
    %c0_75 = arith.constant 0 : index
    %c7_76 = arith.constant 7 : index
    %c0_77 = arith.constant 0 : index
    %121 = vector.load %arg6[%c0_75, %c7_76, %c0_77] : memref<1x8x32xf32, #tpu.memory_space<vmem>>, vector<1x1x32xf32>
    %122 = vector.shape_cast %121 : vector<1x1x32xf32> to vector<1x32xf32>
    %123 = vector.shape_cast %120 : vector<1x32xf32> to vector<1x1x32xf32>
    tpu.vector_store %arg6[%c0_75, %c7_76, %c0_77], %123 {strides = array<i32>} : memref<1x8x32xf32, #tpu.memory_space<vmem>>, vector<1x1x32xf32>,
    %124 = arith.index_cast %116 : i32 to index
    %c0_78 = arith.constant 0 : index
    %125 = vector.load %arg7[%124, %c0_78] : memref<32x4xf32, #tpu.memory_space<vmem>>, vector<1x4xf32>
    %c0_79 = arith.constant 0 : index
    %c7_80 = arith.constant 7 : index
    %c0_81 = arith.constant 0 : index
    %126 = vector.load %arg5[%c0_79, %c7_80, %c0_81] : memref<1x8x4xf32, #tpu.memory_space<vmem>>, vector<1x1x4xf32>
    %127 = vector.shape_cast %126 : vector<1x1x4xf32> to vector<1x4xf32>
    %128 = vector.shape_cast %125 : vector<1x4xf32> to vector<1x1x4xf32>
    tpu.vector_store %arg5[%c0_79, %c7_80, %c0_81], %128 {strides = array<i32>} : memref<1x8x4xf32, #tpu.memory_space<vmem>>, vector<1x1x4xf32>,
    return
  }
  func.func @transform_0(%arg0: i32, %arg1: memref<2x8xi32, #tpu.memory_space<smem>>) -> (i32, i32, i32) {
    %c0_i32 = arith.constant 0 : i32
    %c0_i32_0 = arith.constant 0 : i32
    %c0_i32_1 = arith.constant 0 : i32
    return %arg0, %c0_i32, %c0_i32_0 : i32, i32, i32
  }
  func.func @transform_1(%arg0: i32, %arg1: memref<2x8xi32, #tpu.memory_space<smem>>) -> (i32, i32, i32) {
    %c0_i32 = arith.constant 0 : i32
    %c0_i32_0 = arith.constant 0 : i32
    %c0_i32_1 = arith.constant 0 : i32
    return %arg0, %c0_i32, %c0_i32_0 : i32, i32, i32
  }
  func.func @transform_2(%arg0: i32, %arg1: memref<2x8xi32, #tpu.memory_space<smem>>) -> (i32, i32, i32) {
    %c0_i32 = arith.constant 0 : i32
    %c0_i32_0 = arith.constant 0 : i32
    %c0_i32_1 = arith.constant 0 : i32
    return %arg0, %c0_i32, %c0_i32_0 : i32, i32, i32
  }
  func.func @transform_3(%arg0: i32, %arg1: memref<2x8xi32, #tpu.memory_space<smem>>) -> (i32, i32, i32) {
    %c0_i32 = arith.constant 0 : i32
    %c0_i32_0 = arith.constant 0 : i32
    %c0_i32_1 = arith.constant 0 : i32
    return %arg0, %c0_i32, %c0_i32_0 : i32, i32, i32
  }
  func.func @transform_4(%arg0: i32, %arg1: memref<2x8xi32, #tpu.memory_space<smem>>) -> (i32, i32, i32) {
    %c0_i32 = arith.constant 0 : i32
    %c0_i32_0 = arith.constant 0 : i32
    %c0_i32_1 = arith.constant 0 : i32
    return %arg0, %c0_i32, %c0_i32_0 : i32, i32, i32
  }
}

</mosaic_0001>

<llo_original>
// kernel: tpu_custom_call.1
$region0: #{tpu_custom_call.1}
  #allocation0 [shape = 'u32[]', space=smem, size = 0x4, offset = 0x4, fixed_abs, tag = 'smem constant byte address 0x4 - core index']
  #allocation1 [shape = 'u32[72,128]{1,0:T(1,128)}', space=vmem, size = 0x9000, scoped, tag = 'internal scratch']
  #allocation2 [shape = 'f32[32,4]{1,0:T(8,128)}', space=vmem, size = 0x4000, scoped, tag = 'scratch operand']
  #allocation3 [shape = 's32[1]{0}', space=sflag, size = 0x4, scoped, tag = 'scoped memory for tpu_custom_call.1']
  #allocation4 [shape = 'u8[1024]{0}', space=smem, size = 0x400, scoped, tag = 'prefetched SMEM operand 0']
  %s0 = inlined_call_operand.vmem [shape: s32[2,8], index: 0, kind: input, shape index: {}]
  %s1 = inlined_call_operand.vmem [shape: f32[2,32,4], index: 1, kind: input, shape index: {}]
  %s2 = inlined_call_operand.vmem [shape: f32[2,32,32], index: 2, kind: input, shape index: {}]
  %s3 = inlined_call_operand.vmem [shape: f32[2,1,32], index: 3, kind: input, shape index: {}]
  %s4 = inlined_call_operand.vmem [shape: f32[2,8,4], index: 4, kind: output, shape index: {0}]
  %s5 = inlined_call_operand.hbm [shape: f32[2,8,32], index: 5, kind: output, shape index: {1}]
  %6 = xla_tuple %s4, %s5
  %s7 = sld [smem:[#allocation0]]
  $region53: #{tpu_custom_call.1} parent=0
    _
  %s9 = ssub.s32 1, %s7
  %s10 = scalar_select 0, %s9, %s7
  %s12 = sshll.u32 %s0, 4
  %s13 = int_to_ptr.vmem [resolvable:$true] %s12
  %15 = dma.vmem_to_smem %s13, 32, [#allocation4], [#allocation3]
  %17 = dma.done [#allocation3], 32
  %18 = sfence
  $region1: #{tpu_custom_call.1} parent=0
    #allocation5 [shape = 'u8[8192]{0}', space=vmem, size = 0x2000, scoped, tag = 'output window, operand 1']
    #allocation6 [shape = 's32[2]{0}', space=sflag, size = 0x8, scoped, tag = 'scoped memory for tpu_custom_call.1']
    %19 = vsyncpa [#allocation6], 0
    %s20 = scalar_lea.sflag [#allocation6], 1
    %21 = vsyncpa %s20, 0
    loop: start=0, step=1, limit=4
    $region2: #{tpu_custom_call.1} parent=1 // loop_pre_header
      _
    $region3: #{tpu_custom_call.1} parent=1 // loop_header
      %s23 = sphi 0, %s27
      %p24 = scmp.ge.s32.totalorder %s23, 4
      %s33 = sphi 0, %s35
      %s36 = sphi 0, %s33
      %s37 = sphi 0, %s36
      %s53 = sphi 0, %s37
      %s59 = sphi 0, %s61
      %s62 = sphi 0, %s59
      %s63 = sphi 0, %s62
      %s79 = sphi 0, %s63
      %s85 = sphi 0, %s87
      %s88 = sphi 0, %s85
      %s89 = sphi 0, %s88
      %s105 = sphi 0, %s89
      %s111 = sphi 0, %s113
      %s114 = sphi 0, %s111
      %s115 = sphi 0, %s114
      %s131 = sphi 0, %s115
      %s137 = sphi 0, %s139
      %s140 = sphi 0, %s137
      %s141 = sphi 0, %s140
      %s157 = sphi 0, %s141
    $region4: #{tpu_custom_call.1} parent=1 // loop_header_branch
      %26 = sbr.rel (%p24) target = $region8
    $region5: #{tpu_custom_call.1} parent=1 // loop_body
      %s28 = ssub.s32 %s23, 1
      %s29 = ssub.s32 %s23, 2
      %s30 = sadd.s32 %s23, 1
      %s31 = ssub.s32 %s23, %s30
      %p32 = scmp.eq.s32.totalorder %s31, 0
      %s34 = sadd.s32 %s33, 1
      %s35 = scalar_select %p32, %s33, %s34
      %p38 = pneg %p32
      %p39 = scmp.eq.s32.totalorder %s23, 1
      %p40 = por %p38, %p39
      %p41 = scmp.ne.s32.totalorder %s33, %s36
      %p42 = scmp.eq.s32.totalorder %s23, 0
      %p43 = por %p41, %p42
      %p44 = scmp.ne.s32.totalorder %s33, %s36
      %p45 = scmp.eq.s32.totalorder %s28, 1
      %p46 = por %p44, %p45
      %p47 = scmp.ne.s32.totalorder %s36, %s37
      %p48 = scmp.eq.s32.totalorder %s28, 0
      %p49 = por %p47, %p48
      %p50 = scmp.ne.s32.totalorder %s36, %s37
      %p51 = scmp.eq.s32.totalorder %s29, 1
      %p52 = por %p50, %p51
      %p54 = scmp.ne.s32.totalorder %s37, %s53
      %p55 = scmp.eq.s32.totalorder %s29, 0
      %p56 = por %p54, %p55
      %s57 = ssub.s32 %s23, %s30
      %p58 = scmp.eq.s32.totalorder %s57, 0
      %s60 = sadd.s32 %s59, 1
      %s61 = scalar_select %p58, %s59, %s60
      %p64 = pneg %p58
      %p65 = scmp.eq.s32.totalorder %s23, 1
      %p66 = por %p64, %p65
      %p67 = scmp.ne.s32.totalorder %s59, %s62
      %p68 = scmp.eq.s32.totalorder %s23, 0
      %p69 = por %p67, %p68
      %p70 = scmp.ne.s32.totalorder %s59, %s62
      %p71 = scmp.eq.s32.totalorder %s28, 1
      %p72 = por %p70, %p71
      %p73 = scmp.ne.s32.totalorder %s62, %s63
      %p74 = scmp.eq.s32.totalorder %s28, 0
      %p75 = por %p73, %p74
      %p76 = scmp.ne.s32.totalorder %s62, %s63
      %p77 = scmp.eq.s32.totalorder %s29, 1
      %p78 = por %p76, %p77
      %p80 = scmp.ne.s32.totalorder %s63, %s79
      %p81 = scmp.eq.s32.totalorder %s29, 0
      %p82 = por %p80, %p81
      %s83 = ssub.s32 %s23, %s30
      %p84 = scmp.eq.s32.totalorder %s83, 0
      %s86 = sadd.s32 %s85, 1
      %s87 = scalar_select %p84, %s85, %s86
      %p90 = pneg %p84
      %p91 = scmp.eq.s32.totalorder %s23, 1
      %p92 = por %p90, %p91
      %p93 = scmp.ne.s32.totalorder %s85, %s88
      %p94 = scmp.eq.s32.totalorder %s23, 0
      %p95 = por %p93, %p94
      %p96 = scmp.ne.s32.totalorder %s85, %s88
      %p97 = scmp.eq.s32.totalorder %s28, 1
      %p98 = por %p96, %p97
      %p99 = scmp.ne.s32.totalorder %s88, %s89
      %p100 = scmp.eq.s32.totalorder %s28, 0
      %p101 = por %p99, %p100
      %p102 = scmp.ne.s32.totalorder %s88, %s89
      %p103 = scmp.eq.s32.totalorder %s29, 1
      %p104 = por %p102, %p103
      %p106 = scmp.ne.s32.totalorder %s89, %s105
      %p107 = scmp.eq.s32.totalorder %s29, 0
      %p108 = por %p106, %p107
      %s109 = ssub.s32 %s23, %s30
      %p110 = scmp.eq.s32.totalorder %s109, 0
      %s112 = sadd.s32 %s111, 1
      %s113 = scalar_select %p110, %s111, %s112
      %p116 = pneg %p110
      %p117 = scmp.eq.s32.totalorder %s23, 1
      %p118 = por %p116, %p117
      %p119 = scmp.ne.s32.totalorder %s111, %s114
      %p120 = scmp.eq.s32.totalorder %s23, 0
      %p121 = por %p119, %p120
      %p122 = scmp.ne.s32.totalorder %s111, %s114
      %p123 = scmp.eq.s32.totalorder %s28, 1
      %p124 = por %p122, %p123
      %p125 = scmp.ne.s32.totalorder %s114, %s115
      %p126 = scmp.eq.s32.totalorder %s28, 0
      %p127 = por %p125, %p126
      %p128 = scmp.ne.s32.totalorder %s114, %s115
      %p129 = scmp.eq.s32.totalorder %s29, 1
      %p130 = por %p128, %p129
      %p132 = scmp.ne.s32.totalorder %s115, %s131
      %p133 = scmp.eq.s32.totalorder %s29, 0
      %p134 = por %p132, %p133
      %s135 = ssub.s32 %s23, %s30
      %p136 = scmp.eq.s32.totalorder %s135, 0
      %s138 = sadd.s32 %s137, 1
      %s139 = scalar_select %p136, %s137, %s138
      %p142 = pneg %p136
      %p143 = scmp.eq.s32.totalorder %s23, 1
      %p144 = por %p142, %p143
      %p145 = scmp.ne.s32.totalorder %s137, %s140
      %p146 = scmp.eq.s32.totalorder %s23, 0
      %p147 = por %p145, %p146
      %p148 = scmp.ne.s32.totalorder %s137, %s140
      %p149 = scmp.eq.s32.totalorder %s28, 1
      %p150 = por %p148, %p149
      %p151 = scmp.ne.s32.totalorder %s140, %s141
      %p152 = scmp.eq.s32.totalorder %s28, 0
      %p153 = por %p151, %p152
      %p154 = scmp.ne.s32.totalorder %s140, %s141
      %p155 = scmp.eq.s32.totalorder %s29, 1
      %p156 = por %p154, %p155
      %p158 = scmp.ne.s32.totalorder %s141, %s157
      %p159 = scmp.eq.s32.totalorder %s29, 0
      %p160 = por %p158, %p159
      %p161 = scmp.le.s32.totalorder 1, %s23
      %p162 = scmp.lt.s32.totalorder %s23, 3
      %p163 = pnand %p161, %p162
      %p164 = pneg %p163
      // Predicated region
      $region9: #{tpu_custom_call.1} parent=5 // pred_check
        _
      $region10: #{tpu_custom_call.1} parent=5 // pred_check_branch
        %166 = sbr.rel (%p163) target = $region12
      $region11: #{tpu_custom_call.1} parent=5 // pred_region
        %s167 = ssub.s32 %s23, 1
      $region12: #{tpu_custom_call.1} parent=5 // pred_fallthru
        _
      %p168 = scmp.lt.s32.totalorder %s23, 2
      // Predicated region
      $region13: #{tpu_custom_call.1} parent=5 // pred_check
        %p169 = pneg %p168
      $region14: #{tpu_custom_call.1} parent=5 // pred_check_branch
        %171 = sbr.rel (%p169) target = $region16
      $region15: #{tpu_custom_call.1} parent=5 // pred_region
        // Predicated region
        $region17: #{tpu_custom_call.1} parent=15 // pred_check
          %p172 = pneg %p43
        $region18: #{tpu_custom_call.1} parent=15 // pred_check_branch
          %174 = sbr.rel (%p172) target = $region20
        $region19: #{tpu_custom_call.1} parent=15 // pred_region
          %p175 = scmp.lt.s32.totalorder %s23, 1
          %s176 = scalar_select %p175, %s23, 1
          %s177 = smul.addr %s176, 4
          %s178 = smul.addr %s177, 8
          %s179 = scalar_lea.vmem %s1, %s178
        $region20: #{tpu_custom_call.1} parent=15 // pred_fallthru
          _
        // Predicated region
        $region21: #{tpu_custom_call.1} parent=15 // pred_check
          %p180 = pneg %p69
        $region22: #{tpu_custom_call.1} parent=15 // pred_check_branch
          %182 = sbr.rel (%p180) target = $region24
        $region23: #{tpu_custom_call.1} parent=15 // pred_region
          %p183 = scmp.lt.s32.totalorder %s23, 1
          %s184 = scalar_select %p183, %s23, 1
          %s185 = smul.addr %s184, 4
          %s186 = smul.addr %s185, 8
          %s187 = scalar_lea.vmem %s2, %s186
        $region24: #{tpu_custom_call.1} parent=15 // pred_fallthru
          _
        // Predicated region
        $region25: #{tpu_custom_call.1} parent=15 // pred_check
          %p188 = pneg %p95
        $region26: #{tpu_custom_call.1} parent=15 // pred_check_branch
          %190 = sbr.rel (%p188) target = $region28
        $region27: #{tpu_custom_call.1} parent=15 // pred_region
          %p191 = scmp.lt.s32.totalorder %s23, 1
          %s192 = scalar_select %p191, %s23, 1
          %s193 = scalar_lea.vmem %s3, %s192
        $region28: #{tpu_custom_call.1} parent=15 // pred_fallthru
          _
      $region16: #{tpu_custom_call.1} parent=5 // pred_fallthru
        _
      %p194 = scmp.le.s32.totalorder 1, %s23
      %p195 = scmp.lt.s32.totalorder %s23, 3
      %p196 = pnand %p194, %p195
      %p197 = pneg %p196
      // Predicated region
      $region29: #{tpu_custom_call.1} parent=5 // pred_check
        _
      $region30: #{tpu_custom_call.1} parent=5 // pred_check_branch
        %199 = sbr.rel (%p196) target = $region32
      $region31: #{tpu_custom_call.1} parent=5 // pred_region
        %s200 = ssub.s32 %s23, 1
        %p201 = scmp.lt.s32.totalorder %s28, 1
        %s202 = scalar_select %p201, %s28, 1
        %s203 = smul.addr %s202, 4
        %s204 = smul.addr %s203, 8
        %s205 = scalar_lea.vmem %s1, %s204
        %p206 = pneg %p49
        %p207 = pneg %p46
        %p208 = scmp.lt.s32.totalorder %s28, 1
        %s209 = scalar_select %p208, %s28, 1
        %s210 = smul.addr %s209, 4
        %s211 = smul.addr %s210, 8
        %s212 = scalar_lea.vmem %s2, %s211
        %p213 = pneg %p75
        %p214 = pneg %p72
        %p215 = scmp.lt.s32.totalorder %s28, 1
        %s216 = scalar_select %p215, %s28, 1
        %s217 = scalar_lea.vmem %s3, %s216
        %p218 = pneg %p101
        %p219 = pneg %p98
        %p220 = pneg %p127
        %p221 = pneg %p124
        %p222 = scmp.lt.s32.totalorder %s28, 1
        %s223 = scalar_select %p222, %s28, 1
        %s224 = smul.addr %s223, 8
        %s225 = scalar_lea.vmem %s4, %s224
        %p226 = pneg %p153
        %p227 = pneg %p150
        %s228 = sand.u32 %s140, 1
        %s229 = scalar_lea.sflag [#allocation6], %s228
        %s230 = sand.u32 %s140, 1
        %s231 = smul.addr %s230, 8
        %s232 = scalar_lea.vmem [#allocation5], %s231
        %p233 = scmp.lt.s32.totalorder %s28, 1
        %s234 = scalar_select %p233, %s28, 1
        %s235 = smul.addr %s234, 4
        %s236 = smul.addr %s235, 8
        %s237 = scalar_lea.vmem %s1, %s236
        %p238 = scmp.lt.s32.totalorder %s28, 1
        %s239 = scalar_select %p238, %s28, 1
        %s240 = smul.addr %s239, 4
        %s241 = smul.addr %s240, 8
        %s242 = scalar_lea.vmem %s2, %s241
        %p243 = scmp.lt.s32.totalorder %s28, 1
        %s244 = scalar_select %p243, %s28, 1
        %s245 = scalar_lea.vmem %s3, %s244
        %p246 = scmp.lt.s32.totalorder %s28, 1
        %s247 = scalar_select %p246, %s28, 1
        %s248 = smul.addr %s247, 8
        %s249 = scalar_lea.vmem %s4, %s248
        %v250 = vld [vmem:[%s245] sm:$0x1]
        %v251 = vld [vmem:[%s237] sm:$0xff]
        %v252 = vld [vmem:[%s237 + $0x8] sm:$0xff]
        %v253 = vld [vmem:[%s237 + $0x10] sm:$0xff]
        %v254 = vld [vmem:[%s237 + $0x18] sm:$0xff]
        %v255 = vmul.f32 %v251, 0.5
        %v256 = vmul.f32 %v252, 0.5
        %v257 = vmul.f32 %v253, 0.5
        %v258 = vmul.f32 %v254, 0.5
        %263 = vrot.lane.b32.xlu0 %v255, 126
        %v264 = vpop.permute.xlu0 %263
        %265 = vrot.lane.b32.xlu0 %v256, 126
        %v266 = vpop.permute.xlu0 %265
        %267 = vrot.lane.b32.xlu0 %v257, 126
        %v268 = vpop.permute.xlu0 %267
        %269 = vrot.lane.b32.xlu0 %v258, 126
        %v270 = vpop.permute.xlu0 %269
        %v275 = vsub.f32 %v251, %v264
        %v276 = vsub.f32 %v252, %v266
        %v277 = vsub.f32 %v253, %v268
        %v278 = vsub.f32 %v254, %v270
        %v280 = vperm.slane %v250, 0
        %v282 = vmul.f32 %v275, %v280
        %v283 = vmul.f32 %v276, %v280
        %v284 = vmul.f32 %v277, %v280
        %v285 = vmul.f32 %v278, %v280
        %vm286 = vcmask 15360
        %287 = vst.msk [vmem:[#allocation2] sm:$0xff] %vm286, %v282
        %288 = vst.msk [vmem:[#allocation2 + $0x8] sm:$0xff] %vm286, %v283
        %289 = vst.msk [vmem:[#allocation2 + $0x10] sm:$0xff] %vm286, %v284
        %290 = vst.msk [vmem:[#allocation2 + $0x18] sm:$0xff] %vm286, %v285
        %v291 = vadd.f32 %v251, %v264
        %v292 = vadd.f32 %v252, %v266
        %v293 = vadd.f32 %v253, %v268
        %v294 = vadd.f32 %v254, %v270
        %v295 = vmul.f32 %v291, %v280
        %v296 = vmul.f32 %v292, %v280
        %v297 = vmul.f32 %v293, %v280
        %v298 = vmul.f32 %v294, %v280
        %303 = vrot.lane.b32.xlu0 %v295, 2
        %v304 = vpop.permute.xlu0 %303
        %305 = vrot.lane.b32.xlu0 %v296, 2
        %v306 = vpop.permute.xlu0 %305
        %307 = vrot.lane.b32.xlu0 %v297, 2
        %v308 = vpop.permute.xlu0 %307
        %309 = vrot.lane.b32.xlu0 %v298, 2
        %v310 = vpop.permute.xlu0 %309
        %vm315 = vcmask 31760
        %316 = vst.msk [vmem:[#allocation2] sm:$0xff] %vm315, %v304
        %317 = vst.msk [vmem:[#allocation2 + $0x8] sm:$0xff] %vm315, %v306
        %318 = vst.msk [vmem:[#allocation2 + $0x10] sm:$0xff] %vm315, %v308
        %319 = vst.msk [vmem:[#allocation2 + $0x18] sm:$0xff] %vm315, %v310
        %s320 = smul.u32 %s28, 128
        %s321 = sld [smem:[#allocation4 + %s320]]
        %s322 = scalar_lea.vmem %s242, %s321
        %v323 = vld [vmem:[%s322] sm:$0x1]
        %v324 = vmul.f32 %v323, %v250
        %vm325 = vcmask 253952
        %326 = vst.msk [vmem:[%s232] sm:$0x1] %vm325, %v324
        %s327 = scalar_lea.vmem [#allocation2], %s321
        %v328 = vld [vmem:[%s327] sm:$0x1]
        %vm329 = vcmask 24576
        %330 = vst.msk [vmem:[%s249] sm:$0x1] %vm329, %v328
        %s331 = sadd.s32 %s320, 1
        %s332 = sld [smem:[#allocation4 + %s331]]
        %s333 = scalar_lea.vmem %s242, %s332
        %v334 = vld [vmem:[%s333] sm:$0x1]
        %v335 = vmul.f32 %v334, %v250
        %336 = vst.msk [vmem:[%s232 + $0x1] sm:$0x1] %vm325, %v335
        %s337 = scalar_lea.vmem [#allocation2], %s332
        %v338 = vld [vmem:[%s337] sm:$0x1]
        %339 = vst.msk [vmem:[%s249 + $0x1] sm:$0x1] %vm329, %v338
        %s340 = sadd.s32 %s320, 2
        %s341 = sld [smem:[#allocation4 + %s340]]
        %s342 = scalar_lea.vmem %s242, %s341
        %v343 = vld [vmem:[%s342] sm:$0x1]
        %v344 = vmul.f32 %v343, %v250
        %345 = vst.msk [vmem:[%s232 + $0x2] sm:$0x1] %vm325, %v344
        %s346 = scalar_lea.vmem [#allocation2], %s341
        %v347 = vld [vmem:[%s346] sm:$0x1]
        %348 = vst.msk [vmem:[%s249 + $0x2] sm:$0x1] %vm329, %v347
        %s349 = sadd.s32 %s320, 3
        %s350 = sld [smem:[#allocation4 + %s349]]
        %s351 = scalar_lea.vmem %s242, %s350
        %v352 = vld [vmem:[%s351] sm:$0x1]
        %v353 = vmul.f32 %v352, %v250
        %354 = vst.msk [vmem:[%s232 + $0x3] sm:$0x1] %vm325, %v353
        %s355 = scalar_lea.vmem [#allocation2], %s350
        %v356 = vld [vmem:[%s355] sm:$0x1]
        %357 = vst.msk [vmem:[%s249 + $0x3] sm:$0x1] %vm329, %v356
        %s358 = sadd.s32 %s320, 4
        %s359 = sld [smem:[#allocation4 + %s358]]
        %s360 = scalar_lea.vmem %s242, %s359
        %v361 = vld [vmem:[%s360] sm:$0x1]
        %v362 = vmul.f32 %v361, %v250
        %363 = vst.msk [vmem:[%s232 + $0x4] sm:$0x1] %vm325, %v362
        %s364 = scalar_lea.vmem [#allocation2], %s359
        %v365 = vld [vmem:[%s364] sm:$0x1]
        %366 = vst.msk [vmem:[%s249 + $0x4] sm:$0x1] %vm329, %v365
        %s367 = sadd.s32 %s320, 5
        %s368 = sld [smem:[#allocation4 + %s367]]
        %s369 = scalar_lea.vmem %s242, %s368
        %v370 = vld [vmem:[%s369] sm:$0x1]
        %v371 = vmul.f32 %v370, %v250
        %372 = vst.msk [vmem:[%s232 + $0x5] sm:$0x1] %vm325, %v371
        %s373 = scalar_lea.vmem [#allocation2], %s368
        %v374 = vld [vmem:[%s373] sm:$0x1]
        %375 = vst.msk [vmem:[%s249 + $0x5] sm:$0x1] %vm329, %v374
        %s376 = sadd.s32 %s320, 6
        %s377 = sld [smem:[#allocation4 + %s376]]
        %s378 = scalar_lea.vmem %s242, %s377
        %v379 = vld [vmem:[%s378] sm:$0x1]
        %v380 = vmul.f32 %v379, %v250
        %381 = vst.msk [vmem:[%s232 + $0x6] sm:$0x1] %vm325, %v380
        %s382 = scalar_lea.vmem [#allocation2], %s377
        %v383 = vld [vmem:[%s382] sm:$0x1]
        %384 = vst.msk [vmem:[%s249 + $0x6] sm:$0x1] %vm329, %v383
        %s385 = sadd.s32 %s320, 7
        %s386 = sld [smem:[#allocation4 + %s385]]
        %s387 = scalar_lea.vmem %s242, %s386
        %v388 = vld [vmem:[%s387] sm:$0x1]
        %v389 = vmul.f32 %v388, %v250
        %390 = vst.msk [vmem:[%s232 + $0x7] sm:$0x1] %vm325, %v389
        %s391 = scalar_lea.vmem [#allocation2], %s386
        %v392 = vld [vmem:[%s391] sm:$0x1]
        %393 = vst.msk [vmem:[%s249 + $0x7] sm:$0x1] %vm329, %v392
        %p394 = scmp.lt.s32.totalorder %s28, 1
        %s395 = scalar_select %p394, %s28, 1
        %s396 = smul.addr %s395, 8
        %s397 = scalar_lea.vmem %s4, %s396
        %s398 = sand.u32 %s140, 1
        %s399 = scalar_lea.sflag [#allocation6], %s398
        %s400 = sand.u32 %s140, 1
        %s401 = smul.addr %s400, 8
        %s402 = scalar_lea.vmem [#allocation5], %s401
        // Predicated region
        $region33: #{tpu_custom_call.1} parent=31 // pred_check
          %p403 = pneg %p124
        $region34: #{tpu_custom_call.1} parent=31 // pred_check_branch
          %405 = sbr.rel (%p403) target = $region36
        $region35: #{tpu_custom_call.1} parent=31 // pred_region
          _
        $region36: #{tpu_custom_call.1} parent=31 // pred_fallthru
          _
        // Predicated region
        $region37: #{tpu_custom_call.1} parent=31 // pred_check
          %p406 = pneg %p150
        $region38: #{tpu_custom_call.1} parent=31 // pred_check_branch
          %408 = sbr.rel (%p406) target = $region40
        $region39: #{tpu_custom_call.1} parent=31 // pred_region
          %410 = vsyncadd %s399, 0
          %s411 = smul.addr %s28, 8
          %s412 = scalar_lea.hbm %s5, %s411
          %s414 = sshll.u32 %s402, 4
          %s415 = int_to_ptr.vmem [resolvable:$true] %s414
          %s416 = sshll.u32 %s412, 4
          %s417 = int_to_ptr.hbm [resolvable:$true] %s416
          %419 = dma.vmem_to_hbm [thread:$0]  %s415, 128, %s417, %s399
        $region40: #{tpu_custom_call.1} parent=31 // pred_fallthru
          _
      $region32: #{tpu_custom_call.1} parent=5 // pred_fallthru
        _
      %p420 = scmp.le.s32.totalorder 2, %s23
      // Predicated region
      $region41: #{tpu_custom_call.1} parent=5 // pred_check
        %p421 = pneg %p420
      $region42: #{tpu_custom_call.1} parent=5 // pred_check_branch
        %423 = sbr.rel (%p421) target = $region44
      $region43: #{tpu_custom_call.1} parent=5 // pred_region
        %s424 = ssub.s32 %s23, 2
        // Predicated region
        $region45: #{tpu_custom_call.1} parent=43 // pred_check
          %p425 = pneg %p130
        $region46: #{tpu_custom_call.1} parent=43 // pred_check_branch
          %427 = sbr.rel (%p425) target = $region48
        $region47: #{tpu_custom_call.1} parent=43 // pred_region
          %p428 = scmp.lt.s32.totalorder %s29, 1
          %s429 = scalar_select %p428, %s29, 1
          %s430 = smul.addr %s429, 8
          %s431 = scalar_lea.vmem %s4, %s430
        $region48: #{tpu_custom_call.1} parent=43 // pred_fallthru
          _
        // Predicated region
        $region49: #{tpu_custom_call.1} parent=43 // pred_check
          %p432 = pneg %p156
        $region50: #{tpu_custom_call.1} parent=43 // pred_check_branch
          %434 = sbr.rel (%p432) target = $region52
        $region51: #{tpu_custom_call.1} parent=43 // pred_region
          %s435 = sand.u32 %s141, 1
          %s436 = scalar_lea.sflag [#allocation6], %s435
          %s437 = sand.u32 %s141, 1
          %s438 = smul.addr %s437, 8
          %s439 = scalar_lea.vmem [#allocation5], %s438
          %441 = dma.done %s436, 128
        $region52: #{tpu_custom_call.1} parent=43 // pred_fallthru
          _
      $region44: #{tpu_custom_call.1} parent=5 // pred_fallthru
        _
    $region6: #{tpu_custom_call.1} parent=1 // loop_footer
      %s27 = sadd.s32 1, %s23
    $region7: #{tpu_custom_call.1} parent=1 // loop_footer_branch
      %22 = sbr.rel target = $region3
    $region8: #{tpu_custom_call.1} parent=1 // loop_exit
      _
    %442 = vsyncpa [#allocation6], 1
    %s443 = scalar_lea.sflag [#allocation6], 1
    %444 = vsyncpa %s443, 1

</llo_original>
